<compile_context>
chip_gen: v5e
topology: v5e:2x2
jax: 0.10.0
libtpu: 0.0.40
codegen_flags: <defaults>
</compile_context>

<pallas_src>
import jax
import jax.numpy as jnp
from jax.experimental import pallas as pl
from jax.experimental.pallas import tpu as pltpu


_SUBLANE_F32 = 8  # f32 sublane tile


# ---------------------------------------------------------------------------
# Pallas kernel: y = relu(x @ w + b), one (TM, OUT) batch tile per grid step.
# ---------------------------------------------------------------------------
def _linear_relu_kernel(x_ref, w_ref, b_ref, o_ref):
    # x_ref: (TM, IN) f32   w_ref: (IN, OUT) bf16 (resident)
    # b_ref: (1, OUT) f32   o_ref: (TM, OUT) f32
    x_bf16 = x_ref[...].astype(jnp.bfloat16)          # in-VPU convert (free slot)
    acc = jnp.dot(x_bf16, w_ref[...], preferred_element_type=jnp.float32)
    acc = acc + b_ref[...]                             # broadcast (1, OUT) over rows
    o_ref[...] = jnp.maximum(acc, 0.0).astype(o_ref.dtype)


def _round_up(x, m):
    return (x + m - 1) // m * m


def _choose_tm(B, *, block_m_max=1024):
    """Largest sensible batch tile.

    - small batches: one sublane-aligned tile covering the whole batch;
    - larger batches: biggest tile <= block_m_max while keeping >= 2 grid
      steps so both v7x TensorCores get work (harmless on v5e/v6e).
    """
    b_al = _round_up(max(B, _SUBLANE_F32), _SUBLANE_F32)
    if b_al <= 256:
        return b_al
    tm = min(block_m_max, _round_up(pl.cdiv(b_al, 2), 128))
    return max(_round_up(tm, _SUBLANE_F32), 128)


def linear_relu(x, w_t_bf16, bias_2d, *, block_m_max=1024):
    """x: (B, IN) f32; w_t_bf16: (IN, OUT) bf16 (pre-transposed at init);
    bias_2d: (1, OUT) f32.  Returns (B, OUT) f32."""
    B, IN = x.shape
    OUT = w_t_bf16.shape[1]

    TM = _choose_tm(B, block_m_max=block_m_max)
    grid = (pl.cdiv(B, TM),)   # ragged final block handled by masked stores

    # VMEM budget: double-buffered x/out tiles + (double-buffered) weight/bias,
    # capped at 48 MiB (headroom below v7x's 64 MiB physical VMEM).
    vmem_bytes = 2 * (TM * IN * 4 + TM * OUT * 4 + IN * OUT * 2 + OUT * 4)
    vmem_limit = int(min(max(2 * vmem_bytes, 4 << 20), 48 << 20))

    cost = pl.CostEstimate(
        flops=2 * B * IN * OUT,
        transcendentals=0,
        bytes_accessed=B * IN * 4          # x streamed once as f32
                       + IN * OUT * 2      # resident bf16 weight
                       + OUT * 4           # bias
                       + B * OUT * 4,      # f32 output writeback
    )

    return pl.pallas_call(
        _linear_relu_kernel,
        out_shape=jax.ShapeDtypeStruct((B, OUT), jnp.float32),
        grid=grid,
        in_specs=[
            pl.BlockSpec((TM, IN), lambda i: (i, 0)),    # x: tiled over batch (f32)
            pl.BlockSpec((IN, OUT), lambda i: (0, 0)),   # W: resident (bf16)
            pl.BlockSpec((1, OUT), lambda i: (0, 0)),    # b: resident (f32)
        ],
        out_specs=pl.BlockSpec((TM, OUT), lambda i: (i, 0)),
        compiler_params=pltpu.CompilerParams(
            dimension_semantics=("parallel",),           # shard batch tiles across TCs
            vmem_limit_bytes=vmem_limit,
        ),
        cost_estimate=cost,
    )(x, w_t_bf16, bias_2d)


@jax.jit
def _forward(x, w_t_bf16, bias_2d):
    return linear_relu(x, w_t_bf16, bias_2d)


# ---------------------------------------------------------------------------
# Inner model (what gets wrapped): Linear(128 -> 128) + ReLU
# ---------------------------------------------------------------------------
class InnerLinearReLU:
    def __init__(self, in_features, out_features, key):
        kw, kb = jax.random.split(key)
        bound = 1.0 / (in_features ** 0.5)
        # PyTorch-style init, weight stored pre-transposed (IN, OUT) and
        # pre-cast to bf16, bias pre-reshaped to (1, OUT): no per-call
        # transpose/reshape/cast HBM traffic for the weights.
        weight = jax.random.uniform(
            kw, (out_features, in_features), jnp.float32, -bound, bound)
        bias = jax.random.uniform(
            kb, (out_features,), jnp.float32, -bound, bound)
        self.weight_t_bf16 = weight.T.astype(jnp.bfloat16)    # (IN, OUT)
        self.bias_2d = bias.reshape(1, out_features)           # (1, OUT) f32

    def __call__(self, x):
        return _forward(x, self.weight_t_bf16, self.bias_2d)


# ---------------------------------------------------------------------------
# The DP-DDP wrapper itself: pure delegation, exactly like the PyTorch module.
# ---------------------------------------------------------------------------
class DifferentiallyPrivateDistributedDataParallel:
    # TODO(synk): backward-time per-sample-gradient averaging hooks (the DDP
    # communication part) have no forward-pass Pallas equivalent; forward is
    # pure delegation, matching the PyTorch module.
    def __init__(self, model):
        self.module = model

    def __call__(self, *args, **kwargs):
        return self.module(*args, **kwargs)

    forward = __call__


if __name__ == "__main__":
    key = jax.random.PRNGKey(0)
    k_model, k_x = jax.random.split(key)

    B, H = 512, 128   # lane-dense hidden (128); TM=256 -> grid=(2,) parallel steps
    inner = InnerLinearReLU(H, H, k_model)
    ddp = DifferentiallyPrivateDistributedDataParallel(inner)

    x = jax.random.normal(k_x, (B, H), jnp.float32)

    y = ddp(x)
    jax.block_until_ready(y)

    # Reference (plain JAX) with the same bf16 operands + f32 accumulation.
    y_ref = jnp.maximum(
        jnp.dot(x.astype(jnp.bfloat16), inner.weight_t_bf16,
                preferred_element_type=jnp.float32) + inner.bias_2d,
        0.0)
    assert y.shape == (B, H)
    assert y.dtype == jnp.float32
    assert jnp.allclose(y, y_ref, atol=5e-3, rtol=5e-3)

    print("KERNEL_OK")
</pallas_src>

<mosaic_0001>
module attributes {stable_mosaic.version = 11 : i64} {
  func.func @_linear_relu_kernel(%arg0: i32, %arg1: memref<256x128xf32, #tpu.memory_space<vmem>>, %arg2: memref<128x128xbf16, #tpu.memory_space<vmem>>, %arg3: memref<1x128xf32, #tpu.memory_space<vmem>>, %arg4: memref<256x128xf32, #tpu.memory_space<vmem>>) attributes {dimension_semantics = [#tpu.dimension_semantics<parallel>], iteration_bounds = array<i64: 2>, scalar_prefetch = 0 : i64, scratch_operands = 0 : i64, tpu.core_type = #tpu.core_type<tc>, window_params = [{transform_indices = @transform_0, window_bounds = array<i64: 256, 128>}, {pipeline_mode = #tpu.pipeline_mode<synchronous>, transform_indices = @transform_1, window_bounds = array<i64: 128, 128>}, {pipeline_mode = #tpu.pipeline_mode<synchronous>, transform_indices = @transform_2, window_bounds = array<i64: 1, 128>}, {transform_indices = @transform_3, window_bounds = array<i64: 256, 128>}]} {
    %c0 = arith.constant 0 : index
    %c0_0 = arith.constant 0 : index
    %0 = vector.load %arg1[%c0, %c0_0] : memref<256x128xf32, #tpu.memory_space<vmem>>, vector<256x128xf32>
    %1 = arith.truncf %0 : vector<256x128xf32> to vector<256x128xbf16>
    %c0_1 = arith.constant 0 : index
    %c0_2 = arith.constant 0 : index
    %2 = vector.load %arg2[%c0_1, %c0_2] : memref<128x128xbf16, #tpu.memory_space<vmem>>, vector<128x128xbf16>
    %cst = arith.constant dense<0.000000e+00> : vector<256x128xf32>
    %3 = tpu.matmul %1, %2, %cst {dimension_numbers = #tpu.dot_dimension_numbers<[1], [0], [0], [1], [0, 0, 1, 1], [], []>} : vector<256x128xbf16>, vector<128x128xbf16>, vector<256x128xf32> -> vector<256x128xf32>
    %c0_3 = arith.constant 0 : index
    %c0_4 = arith.constant 0 : index
    %4 = vector.load %arg3[%c0_3, %c0_4] : memref<1x128xf32, #tpu.memory_space<vmem>>, vector<1x128xf32>
    %5 = vector.broadcast %4 : vector<1x128xf32> to vector<256x128xf32>
    %6 = arith.addf %3, %5 : vector<256x128xf32>
    %cst_5 = arith.constant 0.000000e+00 : f32
    %7 = vector.broadcast %cst_5 : f32 to vector<256x128xf32>
    %8 = arith.maximumf %6, %7 : vector<256x128xf32>
    %c0_6 = arith.constant 0 : index
    %c0_7 = arith.constant 0 : index
    %9 = vector.load %arg4[%c0_6, %c0_7] : memref<256x128xf32, #tpu.memory_space<vmem>>, vector<256x128xf32>
    tpu.vector_store %arg4[%c0_6, %c0_7], %8 {strides = array<i32>} : memref<256x128xf32, #tpu.memory_space<vmem>>, vector<256x128xf32>,
    return
  }
  func.func @transform_0(%arg0: i32) -> (i32, i32) {
    %c0_i32 = arith.constant 0 : i32
    %c0_i32_0 = arith.constant 0 : i32
    return %arg0, %c0_i32 : i32, i32
  }
  func.func @transform_1(%arg0: i32) -> (i32, i32) {
    %c0_i32 = arith.constant 0 : i32
    %c0_i32_0 = arith.constant 0 : i32
    %c0_i32_1 = arith.constant 0 : i32
    return %c0_i32, %c0_i32_0 : i32, i32
  }
  func.func @transform_2(%arg0: i32) -> (i32, i32) {
    %c0_i32 = arith.constant 0 : i32
    %c0_i32_0 = arith.constant 0 : i32
    %c0_i32_1 = arith.constant 0 : i32
    return %c0_i32, %c0_i32_0 : i32, i32
  }
  func.func @transform_3(%arg0: i32) -> (i32, i32) {
    %c0_i32 = arith.constant 0 : i32
    %c0_i32_0 = arith.constant 0 : i32
    return %arg0, %c0_i32 : i32, i32
  }
}

</mosaic_0001>

<llo_original>
// kernel: _forward.1
$region0: #{_forward.1}
  #allocation0 [shape = 'u32[]', space=smem, size = 0x4, offset = 0x4, fixed_abs, tag = 'smem constant byte address 0x4 - core index']
  #allocation1 [shape = 'u32[72,128]{1,0:T(1,128)}', space=vmem, size = 0x9000, scoped, tag = 'internal scratch']
  %s0 = inlined_call_operand.hbm [shape: f32[512,128], index: 0, kind: input, shape index: {}]
  %s1 = inlined_call_operand.hbm [shape: bf16[128,128], index: 1, kind: input, shape index: {}]
  %s2 = inlined_call_operand.vmem [shape: f32[1,128], index: 2, kind: input, shape index: {}]
  %s3 = inlined_call_operand.hbm [shape: f32[512,128], index: 3, kind: output, shape index: {}]
  %s4 = sld [smem:[#allocation0]]
  $region53: #{_forward.1} parent=0
    _
  %s6 = ssub.s32 1, %s4
  %s7 = scalar_select 0, %s6, %s4
  $region1: #{_forward.1} parent=0
    #allocation2 [shape = 'u8[262144]{0}', space=vmem, size = 0x40000, scoped, tag = 'input window, operand 0']
    #allocation3 [shape = 's32[2]{0}', space=sflag, size = 0x8, scoped, tag = 'scoped memory for _forward.1']
    #allocation4 [shape = 's32[2]{0}', space=sflag, size = 0x8, scoped, tag = 'scoped memory for _forward.1']
    #allocation5 [shape = 'u8[32768]{0}', space=vmem, size = 0x8000, scoped, tag = 'input window, operand 1, single buffered']
    #allocation6 [shape = 's32[1]{0}', space=sflag, size = 0x4, scoped, tag = 'scoped memory for _forward.1']
    #allocation7 [shape = 'u8[262144]{0}', space=vmem, size = 0x40000, scoped, tag = 'output window, operand 0']
    %8 = vsyncpa [#allocation3], 0
    %s9 = scalar_lea.sflag [#allocation3], 1
    %10 = vsyncpa %s9, 0
    %11 = vsyncpa [#allocation6], 0
    %12 = vsyncpa [#allocation4], 0
    %s13 = scalar_lea.sflag [#allocation4], 1
    %14 = vsyncpa %s13, 0
    loop: start=0, step=1, limit=4
    $region2: #{_forward.1} parent=1 // loop_pre_header
      _
    $region3: #{_forward.1} parent=1 // loop_header
      %s16 = sphi 0, %s20
      %p17 = scmp.ge.s32.totalorder %s16, 4
      %s26 = sphi 0, %s28
      %s29 = sphi 0, %s26
      %s30 = sphi 0, %s29
      %s46 = sphi 0, %s30
      %s50 = sphi 0, %s50
      %s52 = sphi 0, %s50
      %s53 = sphi 0, %s52
      %s67 = sphi 0, %s53
      %s71 = sphi 0, %s71
      %s73 = sphi 0, %s71
      %s74 = sphi 0, %s73
      %s88 = sphi 0, %s74
      %s94 = sphi 0, %s96
      %s97 = sphi 0, %s94
      %s98 = sphi 0, %s97
      %s114 = sphi 0, %s98
    $region4: #{_forward.1} parent=1 // loop_header_branch
      %19 = sbr.rel (%p17) target = $region8
    $region5: #{_forward.1} parent=1 // loop_body
      %s21 = ssub.s32 %s16, 1
      %s22 = ssub.s32 %s16, 2
      %s23 = sadd.s32 %s16, 1
      %s24 = ssub.s32 %s16, %s23
      %p25 = scmp.eq.s32.totalorder %s24, 0
      %s27 = sadd.s32 %s26, 1
      %s28 = scalar_select %p25, %s26, %s27
      %p31 = pneg %p25
      %p32 = scmp.eq.s32.totalorder %s16, 1
      %p33 = por %p31, %p32
      %p34 = scmp.ne.s32.totalorder %s26, %s29
      %p35 = scmp.eq.s32.totalorder %s16, 0
      %p36 = por %p34, %p35
      %p37 = scmp.ne.s32.totalorder %s26, %s29
      %p38 = scmp.eq.s32.totalorder %s21, 1
      %p39 = por %p37, %p38
      %p40 = scmp.ne.s32.totalorder %s29, %s30
      %p41 = scmp.eq.s32.totalorder %s21, 0
      %p42 = por %p40, %p41
      %p43 = scmp.ne.s32.totalorder %s29, %s30
      %p44 = scmp.eq.s32.totalorder %s22, 1
      %p45 = por %p43, %p44
      %p47 = scmp.ne.s32.totalorder %s30, %s46
      %p48 = scmp.eq.s32.totalorder %s22, 0
      %p49 = por %p47, %p48
      %s51 = sadd.s32 %s50, 1
      %p54 = scmp.eq.s32.totalorder %s16, 1
      %p55 = scmp.ne.s32.totalorder %s50, %s52
      %p56 = scmp.eq.s32.totalorder %s16, 0
      %p57 = por %p55, %p56
      %p58 = scmp.ne.s32.totalorder %s50, %s52
      %p59 = scmp.eq.s32.totalorder %s21, 1
      %p60 = por %p58, %p59
      %p61 = scmp.ne.s32.totalorder %s52, %s53
      %p62 = scmp.eq.s32.totalorder %s21, 0
      %p63 = por %p61, %p62
      %p64 = scmp.ne.s32.totalorder %s52, %s53
      %p65 = scmp.eq.s32.totalorder %s22, 1
      %p66 = por %p64, %p65
      %p68 = scmp.ne.s32.totalorder %s53, %s67
      %p69 = scmp.eq.s32.totalorder %s22, 0
      %p70 = por %p68, %p69
      %s72 = sadd.s32 %s71, 1
      %p75 = scmp.eq.s32.totalorder %s16, 1
      %p76 = scmp.ne.s32.totalorder %s71, %s73
      %p77 = scmp.eq.s32.totalorder %s16, 0
      %p78 = por %p76, %p77
      %p79 = scmp.ne.s32.totalorder %s71, %s73
      %p80 = scmp.eq.s32.totalorder %s21, 1
      %p81 = por %p79, %p80
      %p82 = scmp.ne.s32.totalorder %s73, %s74
      %p83 = scmp.eq.s32.totalorder %s21, 0
      %p84 = por %p82, %p83
      %p85 = scmp.ne.s32.totalorder %s73, %s74
      %p86 = scmp.eq.s32.totalorder %s22, 1
      %p87 = por %p85, %p86
      %p89 = scmp.ne.s32.totalorder %s74, %s88
      %p90 = scmp.eq.s32.totalorder %s22, 0
      %p91 = por %p89, %p90
      %s92 = ssub.s32 %s16, %s23
      %p93 = scmp.eq.s32.totalorder %s92, 0
      %s95 = sadd.s32 %s94, 1
      %s96 = scalar_select %p93, %s94, %s95
      %p99 = pneg %p93
      %p100 = scmp.eq.s32.totalorder %s16, 1
      %p101 = por %p99, %p100
      %p102 = scmp.ne.s32.totalorder %s94, %s97
      %p103 = scmp.eq.s32.totalorder %s16, 0
      %p104 = por %p102, %p103
      %p105 = scmp.ne.s32.totalorder %s94, %s97
      %p106 = scmp.eq.s32.totalorder %s21, 1
      %p107 = por %p105, %p106
      %p108 = scmp.ne.s32.totalorder %s97, %s98
      %p109 = scmp.eq.s32.totalorder %s21, 0
      %p110 = por %p108, %p109
      %p111 = scmp.ne.s32.totalorder %s97, %s98
      %p112 = scmp.eq.s32.totalorder %s22, 1
      %p113 = por %p111, %p112
      %p115 = scmp.ne.s32.totalorder %s98, %s114
      %p116 = scmp.eq.s32.totalorder %s22, 0
      %p117 = por %p115, %p116
      %p118 = scmp.le.s32.totalorder 1, %s16
      %p119 = scmp.lt.s32.totalorder %s16, 3
      %p120 = pnand %p118, %p119
      %p121 = pneg %p120
      // Predicated region
      $region9: #{_forward.1} parent=5 // pred_check
        _
      $region10: #{_forward.1} parent=5 // pred_check_branch
        %123 = sbr.rel (%p120) target = $region12
      $region11: #{_forward.1} parent=5 // pred_region
        %s124 = ssub.s32 %s16, 1
        // Predicated region
        $region13: #{_forward.1} parent=11 // pred_check
          %p125 = pneg %p63
        $region14: #{_forward.1} parent=11 // pred_check_branch
          %127 = sbr.rel (%p125) target = $region16
        $region15: #{_forward.1} parent=11 // pred_region
          %129 = vsyncadd [#allocation6], 0
          %s130 = sshll.u32 %s1, 4
          %s131 = int_to_ptr.hbm [resolvable:$true] %s130
          %s132 = sshll.u32 [#allocation5], 4
          %s133 = int_to_ptr.vmem [resolvable:$true] %s132
          %138 = dma.hbm_to_vmem [thread:$0]  %s131, 1024, %s133, [#allocation6], 64, 64, 4
        $region16: #{_forward.1} parent=11 // pred_fallthru
          _
        // Predicated region
        $region17: #{_forward.1} parent=11 // pred_check
          %p139 = pneg %p84
        $region18: #{_forward.1} parent=11 // pred_check_branch
          %141 = sbr.rel (%p139) target = $region20
        $region19: #{_forward.1} parent=11 // pred_region
          _
        $region20: #{_forward.1} parent=11 // pred_fallthru
          _
      $region12: #{_forward.1} parent=5 // pred_fallthru
        _
      %p142 = scmp.lt.s32.totalorder %s16, 2
      // Predicated region
      $region21: #{_forward.1} parent=5 // pred_check
        %p143 = pneg %p142
      $region22: #{_forward.1} parent=5 // pred_check_branch
        %145 = sbr.rel (%p143) target = $region24
      $region23: #{_forward.1} parent=5 // pred_region
        // Predicated region
        $region25: #{_forward.1} parent=23 // pred_check
          %p146 = pneg %p36
        $region26: #{_forward.1} parent=23 // pred_check_branch
          %148 = sbr.rel (%p146) target = $region28
        $region27: #{_forward.1} parent=23 // pred_region
          %s149 = sand.u32 %s26, 1
          %s150 = scalar_lea.sflag [#allocation3], %s149
          %s151 = sand.u32 %s26, 1
          %s152 = smul.addr %s151, 256
          %s153 = scalar_lea.vmem [#allocation2], %s152
          %s154 = smul.u32 32, %s16
          %156 = vsyncadd %s150, 0
          %s157 = smul.addr %s154, 8
          %s158 = scalar_lea.hbm %s0, %s157
          %s159 = sshll.u32 %s158, 4
          %s160 = int_to_ptr.hbm [resolvable:$true] %s159
          %s161 = sshll.u32 %s153, 4
          %s162 = int_to_ptr.vmem [resolvable:$true] %s161
          %167 = dma.hbm_to_vmem [thread:$0]  %s160, 4096, %s162, %s150, 128, 128, 8
        $region28: #{_forward.1} parent=23 // pred_fallthru
          _
      $region24: #{_forward.1} parent=5 // pred_fallthru
        _
      %p168 = scmp.le.s32.totalorder 1, %s16
      %p169 = scmp.lt.s32.totalorder %s16, 3
      %p170 = pnand %p168, %p169
      %p171 = pneg %p170
      // Predicated region
      $region29: #{_forward.1} parent=5 // pred_check
        _
      $region30: #{_forward.1} parent=5 // pred_check_branch
        %173 = sbr.rel (%p170) target = $region32
      $region31: #{_forward.1} parent=5 // pred_region
        %s174 = ssub.s32 %s16, 1
        %s175 = sand.u32 %s29, 1
        %s176 = scalar_lea.sflag [#allocation3], %s175
        %s177 = sand.u32 %s29, 1
        %s178 = smul.addr %s177, 256
        %s179 = scalar_lea.vmem [#allocation2], %s178
        // Predicated region
        $region33: #{_forward.1} parent=31 // pred_check
          %p180 = pneg %p42
        $region34: #{_forward.1} parent=31 // pred_check_branch
          %182 = sbr.rel (%p180) target = $region36
        $region35: #{_forward.1} parent=31 // pred_region
          %184 = dma.done %s176, 4096
        $region36: #{_forward.1} parent=31 // pred_fallthru
          _
        // Predicated region
        $region37: #{_forward.1} parent=31 // pred_check
          %p185 = pneg %p63
        $region38: #{_forward.1} parent=31 // pred_check_branch
          %187 = sbr.rel (%p185) target = $region40
        $region39: #{_forward.1} parent=31 // pred_region
          %189 = dma.done [#allocation6], 1024
        $region40: #{_forward.1} parent=31 // pred_fallthru
          _
        %s190 = sand.u32 %s29, 1
        %s191 = scalar_lea.sflag [#allocation3], %s190
        %s192 = sand.u32 %s29, 1
        %s193 = smul.addr %s192, 256
        %s194 = scalar_lea.vmem [#allocation2], %s193
        %p195 = pneg %p42
        %p196 = pneg %p39
        %p197 = pneg %p63
        %p198 = pneg %p60
        %p199 = pneg %p84
        %p200 = pneg %p81
        %p201 = pneg %p110
        %p202 = pneg %p107
        %s203 = sand.u32 %s97, 1
        %s204 = scalar_lea.sflag [#allocation4], %s203
        %s205 = sand.u32 %s97, 1
        %s206 = smul.addr %s205, 256
        %s207 = scalar_lea.vmem [#allocation7], %s206
        %s208 = smul.u32 32, %s21
        %s209 = smul.u32 32, %s21
        %v210 = vld [vmem:[%s179] sm:$0xff]
        %v211 = vld [vmem:[%s179 + $0x8] sm:$0xff]
        %v212 = vld [vmem:[%s179 + $0x10] sm:$0xff]
        %v213 = vld [vmem:[%s179 + $0x18] sm:$0xff]
        %v214 = vld [vmem:[%s179 + $0x20] sm:$0xff]
        %v215 = vld [vmem:[%s179 + $0x28] sm:$0xff]
        %v216 = vld [vmem:[%s179 + $0x30] sm:$0xff]
        %v217 = vld [vmem:[%s179 + $0x38] sm:$0xff]
        %v218 = vld [vmem:[%s179 + $0x40] sm:$0xff]
        %v219 = vld [vmem:[%s179 + $0x48] sm:$0xff]
        %v220 = vld [vmem:[%s179 + $0x50] sm:$0xff]
        %v221 = vld [vmem:[%s179 + $0x58] sm:$0xff]
        %v222 = vld [vmem:[%s179 + $0x60] sm:$0xff]
        %v223 = vld [vmem:[%s179 + $0x68] sm:$0xff]
        %v224 = vld [vmem:[%s179 + $0x70] sm:$0xff]
        %v225 = vld [vmem:[%s179 + $0x78] sm:$0xff]
        %v226 = vld [vmem:[%s179 + $0x80] sm:$0xff]
        %v227 = vld [vmem:[%s179 + $0x88] sm:$0xff]
        %v228 = vld [vmem:[%s179 + $0x90] sm:$0xff]
        %v229 = vld [vmem:[%s179 + $0x98] sm:$0xff]
        %v230 = vld [vmem:[%s179 + $0xa0] sm:$0xff]
        %v231 = vld [vmem:[%s179 + $0xa8] sm:$0xff]
        %v232 = vld [vmem:[%s179 + $0xb0] sm:$0xff]
        %v233 = vld [vmem:[%s179 + $0xb8] sm:$0xff]
        %v234 = vld [vmem:[%s179 + $0xc0] sm:$0xff]
        %v235 = vld [vmem:[%s179 + $0xc8] sm:$0xff]
        %v236 = vld [vmem:[%s179 + $0xd0] sm:$0xff]
        %v237 = vld [vmem:[%s179 + $0xd8] sm:$0xff]
        %v238 = vld [vmem:[%s179 + $0xe0] sm:$0xff]
        %v239 = vld [vmem:[%s179 + $0xe8] sm:$0xff]
        %v240 = vld [vmem:[%s179 + $0xf0] sm:$0xff]
        %v241 = vld [vmem:[%s179 + $0xf8] sm:$0xff]
        %v242 = vpack.c.bf16 %v211, %v210
        %v243 = vpack.c.bf16 %v213, %v212
        %v244 = vpack.c.bf16 %v215, %v214
        %v245 = vpack.c.bf16 %v217, %v216
        %v246 = vpack.c.bf16 %v219, %v218
        %v247 = vpack.c.bf16 %v221, %v220
        %v248 = vpack.c.bf16 %v223, %v222
        %v249 = vpack.c.bf16 %v225, %v224
        %v250 = vpack.c.bf16 %v227, %v226
        %v251 = vpack.c.bf16 %v229, %v228
        %v252 = vpack.c.bf16 %v231, %v230
        %v253 = vpack.c.bf16 %v233, %v232
        %v254 = vpack.c.bf16 %v235, %v234
        %v255 = vpack.c.bf16 %v237, %v236
        %v256 = vpack.c.bf16 %v239, %v238
        %v257 = vpack.c.bf16 %v241, %v240
        %v258 = vld [vmem:[#allocation5] sm:$0xf]
        %v259 = vld [vmem:[#allocation5 + $0x4] sm:$0xf]
        %v260 = vld [vmem:[#allocation5 + $0x8] sm:$0xf]
        %v261 = vld [vmem:[#allocation5 + $0xc] sm:$0xf]
        %v262 = vld [vmem:[#allocation5 + $0x10] sm:$0xf]
        %v263 = vld [vmem:[#allocation5 + $0x14] sm:$0xf]
        %v264 = vld [vmem:[#allocation5 + $0x18] sm:$0xf]
        %v265 = vld [vmem:[#allocation5 + $0x1c] sm:$0xf]
        %v266 = vld [vmem:[#allocation5 + $0x20] sm:$0xf]
        %v267 = vld [vmem:[#allocation5 + $0x24] sm:$0xf]
        %v268 = vld [vmem:[#allocation5 + $0x28] sm:$0xf]
        %v269 = vld [vmem:[#allocation5 + $0x2c] sm:$0xf]
        %v270 = vld [vmem:[#allocation5 + $0x30] sm:$0xf]
        %v271 = vld [vmem:[#allocation5 + $0x34] sm:$0xf]
        %v272 = vld [vmem:[#allocation5 + $0x38] sm:$0xf]
        %v273 = vld [vmem:[#allocation5 + $0x3c] sm:$0xf]
        %v274 = vld [vmem:[%s2] sm:$0x1]
        %v276 = vperm.slane %v274, 0
        %v294 = vunpack.c.l.b16 %v258
        %v295 = vunpack.c.l.b16 %v259
        %v296 = vunpack.c.l.b16 %v260
        %v297 = vunpack.c.l.b16 %v261
        %v298 = vunpack.c.l.b16 %v262
        %v299 = vunpack.c.l.b16 %v263
        %v300 = vunpack.c.l.b16 %v264
        %v301 = vunpack.c.l.b16 %v265
        %v302 = vunpack.c.l.b16 %v266
        %v303 = vunpack.c.l.b16 %v267
        %v304 = vunpack.c.l.b16 %v268
        %v305 = vunpack.c.l.b16 %v269
        %v306 = vunpack.c.l.b16 %v270
        %v307 = vunpack.c.l.b16 %v271
        %v308 = vunpack.c.l.b16 %v272
        %v309 = vunpack.c.l.b16 %v273
        %v310 = vpack.c.b16 %v295, %v294
        %v311 = vpack.c.b16 %v297, %v296
        %v312 = vpack.c.b16 %v299, %v298
        %v313 = vpack.c.b16 %v301, %v300
        %v314 = vpack.c.b16 %v303, %v302
        %v315 = vpack.c.b16 %v305, %v304
        %v316 = vpack.c.b16 %v307, %v306
        %v317 = vpack.c.b16 %v309, %v308
        %326 = vmatpush.bf16.msra.mxu0 %v317
        %327 = vmatpush.bf16.msra.mxu0 %v316
        %328 = vmatpush.bf16.msra.mxu0 %v315
        %329 = vmatpush.bf16.msra.mxu0 %v314
        %330 = vmatpush.bf16.msra.mxu0 %v313
        %331 = vmatpush.bf16.msra.mxu0 %v312
        %332 = vmatpush.bf16.msra.mxu0 %v311
        %333 = vmatpush.bf16.msra.mxu0 %v310
        %334 = vmatmul.bf16.gmra.mxu0 %v242
        %v335 = vpop.f32.mrf.mxu0
        %v336 = vadd.f32 %v276, %v335
        %v337 = vpop.f32.mrf.mxu0
        %v338 = vadd.f32 %v276, %v337
        %339 = vmatmul.bf16.gmra.mxu0 %v243
        %v340 = vpop.f32.mrf.mxu0
        %v341 = vadd.f32 %v276, %v340
        %v342 = vpop.f32.mrf.mxu0
        %v343 = vadd.f32 %v276, %v342
        %344 = vmatmul.bf16.gmra.mxu0 %v244
        %v345 = vpop.f32.mrf.mxu0
        %v346 = vadd.f32 %v276, %v345
        %v347 = vpop.f32.mrf.mxu0
        %v348 = vadd.f32 %v276, %v347
        %349 = vmatmul.bf16.gmra.mxu0 %v245
        %v350 = vpop.f32.mrf.mxu0
        %v351 = vadd.f32 %v276, %v350
        %v352 = vpop.f32.mrf.mxu0
        %v353 = vadd.f32 %v276, %v352
        %354 = vmatmul.bf16.gmra.mxu0 %v246
        %v355 = vpop.f32.mrf.mxu0
        %v356 = vadd.f32 %v276, %v355
        %v357 = vpop.f32.mrf.mxu0
        %v358 = vadd.f32 %v276, %v357
        %359 = vmatmul.bf16.gmra.mxu0 %v247
        %v360 = vpop.f32.mrf.mxu0
        %v361 = vadd.f32 %v276, %v360
        %v362 = vpop.f32.mrf.mxu0
        %v363 = vadd.f32 %v276, %v362
        %364 = vmatmul.bf16.gmra.mxu0 %v248
        %v365 = vpop.f32.mrf.mxu0
        %v366 = vadd.f32 %v276, %v365
        %v367 = vpop.f32.mrf.mxu0
        %v368 = vadd.f32 %v276, %v367
        %369 = vmatmul.bf16.gmra.mxu0 %v249
        %v370 = vpop.f32.mrf.mxu0
        %v371 = vadd.f32 %v276, %v370
        %v372 = vpop.f32.mrf.mxu0
        %v373 = vadd.f32 %v276, %v372
        %374 = vmatmul.bf16.gmra.mxu0 %v250
        %v375 = vpop.f32.mrf.mxu0
        %v376 = vadd.f32 %v276, %v375
        %v377 = vpop.f32.mrf.mxu0
        %v378 = vadd.f32 %v276, %v377
        %379 = vmatmul.bf16.gmra.mxu0 %v251
        %v380 = vpop.f32.mrf.mxu0
        %v381 = vadd.f32 %v276, %v380
        %v382 = vpop.f32.mrf.mxu0
        %v383 = vadd.f32 %v276, %v382
        %384 = vmatmul.bf16.gmra.mxu0 %v252
        %v385 = vpop.f32.mrf.mxu0
        %v386 = vadd.f32 %v276, %v385
        %v387 = vpop.f32.mrf.mxu0
        %v388 = vadd.f32 %v276, %v387
        %389 = vmatmul.bf16.gmra.mxu0 %v253
        %v390 = vpop.f32.mrf.mxu0
        %v391 = vadd.f32 %v276, %v390
        %v392 = vpop.f32.mrf.mxu0
        %v393 = vadd.f32 %v276, %v392
        %394 = vmatmul.bf16.gmra.mxu0 %v254
        %v395 = vpop.f32.mrf.mxu0
        %v396 = vadd.f32 %v276, %v395
        %v397 = vpop.f32.mrf.mxu0
        %v398 = vadd.f32 %v276, %v397
        %399 = vmatmul.bf16.gmra.mxu0 %v255
        %v400 = vpop.f32.mrf.mxu0
        %v401 = vadd.f32 %v276, %v400
        %v402 = vpop.f32.mrf.mxu0
        %v403 = vadd.f32 %v276, %v402
        %404 = vmatmul.bf16.gmra.mxu0 %v256
        %v405 = vpop.f32.mrf.mxu0
        %v406 = vadd.f32 %v276, %v405
        %v407 = vpop.f32.mrf.mxu0
        %v408 = vadd.f32 %v276, %v407
        %409 = vmatmul.bf16.gmra.mxu0 %v257
        %v410 = vpop.f32.mrf.mxu0
        %v411 = vadd.f32 %v276, %v410
        %v412 = vpop.f32.mrf.mxu0
        %v413 = vadd.f32 %v276, %v412
        %414 = vdwg.mxu0
        %v415 = vmax.f32 %v336, 0.0
        %v416 = vmax.f32 %v338, 0.0
        %v417 = vmax.f32 %v341, 0.0
        %v418 = vmax.f32 %v343, 0.0
        %v419 = vmax.f32 %v346, 0.0
        %v420 = vmax.f32 %v348, 0.0
        %v421 = vmax.f32 %v351, 0.0
        %v422 = vmax.f32 %v353, 0.0
        %v423 = vmax.f32 %v356, 0.0
        %v424 = vmax.f32 %v358, 0.0
        %v425 = vmax.f32 %v361, 0.0
        %v426 = vmax.f32 %v363, 0.0
        %v427 = vmax.f32 %v366, 0.0
        %v428 = vmax.f32 %v368, 0.0
        %v429 = vmax.f32 %v371, 0.0
        %v430 = vmax.f32 %v373, 0.0
        %v431 = vmax.f32 %v376, 0.0
        %v432 = vmax.f32 %v378, 0.0
        %v433 = vmax.f32 %v381, 0.0
        %v434 = vmax.f32 %v383, 0.0
        %v435 = vmax.f32 %v386, 0.0
        %v436 = vmax.f32 %v388, 0.0
        %v437 = vmax.f32 %v391, 0.0
        %v438 = vmax.f32 %v393, 0.0
        %v439 = vmax.f32 %v396, 0.0
        %v440 = vmax.f32 %v398, 0.0
        %v441 = vmax.f32 %v401, 0.0
        %v442 = vmax.f32 %v403, 0.0
        %v443 = vmax.f32 %v406, 0.0
        %v444 = vmax.f32 %v408, 0.0
        %v445 = vmax.f32 %v411, 0.0
        %v446 = vmax.f32 %v413, 0.0
        %447 = vst [vmem:[%s207] sm:$0xff] %v415
        %448 = vst [vmem:[%s207 + $0x8] sm:$0xff] %v416
        %449 = vst [vmem:[%s207 + $0x10] sm:$0xff] %v417
        %450 = vst [vmem:[%s207 + $0x18] sm:$0xff] %v418
        %451 = vst [vmem:[%s207 + $0x20] sm:$0xff] %v419
        %452 = vst [vmem:[%s207 + $0x28] sm:$0xff] %v420
        %453 = vst [vmem:[%s207 + $0x30] sm:$0xff] %v421
        %454 = vst [vmem:[%s207 + $0x38] sm:$0xff] %v422
        %455 = vst [vmem:[%s207 + $0x40] sm:$0xff] %v423
        %456 = vst [vmem:[%s207 + $0x48] sm:$0xff] %v424
        %457 = vst [vmem:[%s207 + $0x50] sm:$0xff] %v425
        %458 = vst [vmem:[%s207 + $0x58] sm:$0xff] %v426
        %459 = vst [vmem:[%s207 + $0x60] sm:$0xff] %v427
        %460 = vst [vmem:[%s207 + $0x68] sm:$0xff] %v428
        %461 = vst [vmem:[%s207 + $0x70] sm:$0xff] %v429
        %462 = vst [vmem:[%s207 + $0x78] sm:$0xff] %v430
        %463 = vst [vmem:[%s207 + $0x80] sm:$0xff] %v431
        %464 = vst [vmem:[%s207 + $0x88] sm:$0xff] %v432
        %465 = vst [vmem:[%s207 + $0x90] sm:$0xff] %v433
        %466 = vst [vmem:[%s207 + $0x98] sm:$0xff] %v434
        %467 = vst [vmem:[%s207 + $0xa0] sm:$0xff] %v435
        %468 = vst [vmem:[%s207 + $0xa8] sm:$0xff] %v436
        %469 = vst [vmem:[%s207 + $0xb0] sm:$0xff] %v437
        %470 = vst [vmem:[%s207 + $0xb8] sm:$0xff] %v438
        %471 = vst [vmem:[%s207 + $0xc0] sm:$0xff] %v439
        %472 = vst [vmem:[%s207 + $0xc8] sm:$0xff] %v440
        %473 = vst [vmem:[%s207 + $0xd0] sm:$0xff] %v441
        %474 = vst [vmem:[%s207 + $0xd8] sm:$0xff] %v442
        %475 = vst [vmem:[%s207 + $0xe0] sm:$0xff] %v443
        %476 = vst [vmem:[%s207 + $0xe8] sm:$0xff] %v444
        %477 = vst [vmem:[%s207 + $0xf0] sm:$0xff] %v445
        %478 = vst [vmem:[%s207 + $0xf8] sm:$0xff] %v446
        %s479 = sand.u32 %s97, 1
        %s480 = scalar_lea.sflag [#allocation4], %s479
        %s481 = sand.u32 %s97, 1
        %s482 = smul.addr %s481, 256
        %s483 = scalar_lea.vmem [#allocation7], %s482
        // Predicated region
        $region41: #{_forward.1} parent=31 // pred_check
          %p484 = pneg %p107
        $region42: #{_forward.1} parent=31 // pred_check_branch
          %486 = sbr.rel (%p484) target = $region44
        $region43: #{_forward.1} parent=31 // pred_region
          %s487 = smul.u32 32, %s21
          %489 = vsyncadd %s480, 0
          %s490 = smul.addr %s487, 8
          %s491 = scalar_lea.hbm %s3, %s490
          %s492 = sshll.u32 %s483, 4
          %s493 = int_to_ptr.vmem [resolvable:$true] %s492
          %s494 = sshll.u32 %s491, 4
          %s495 = int_to_ptr.hbm [resolvable:$true] %s494
          %500 = dma.vmem_to_hbm [thread:$0]  %s493, 4096, %s495, %s480, 128, 128, 8
        $region44: #{_forward.1} parent=31 // pred_fallthru
          _
      $region32: #{_forward.1} parent=5 // pred_fallthru
        _
      %p501 = scmp.le.s32.totalorder 2, %s16
      // Predicated region
      $region45: #{_forward.1} parent=5 // pred_check
        %p502 = pneg %p501
      $region46: #{_forward.1} parent=5 // pred_check_branch
        %504 = sbr.rel (%p502) target = $region48
      $region47: #{_forward.1} parent=5 // pred_region
        %s505 = ssub.s32 %s16, 2
        // Predicated region
        $region49: #{_forward.1} parent=47 // pred_check
          %p506 = pneg %p113
        $region50: #{_forward.1} parent=47 // pred_check_branch
          %508 = sbr.rel (%p506) target = $region52
        $region51: #{_forward.1} parent=47 // pred_region
          %s509 = sand.u32 %s98, 1
          %s510 = scalar_lea.sflag [#allocation4], %s509
          %s511 = sand.u32 %s98, 1
          %s512 = smul.addr %s511, 256
          %s513 = scalar_lea.vmem [#allocation7], %s512
          %515 = dma.done %s510, 4096
        $region52: #{_forward.1} parent=47 // pred_fallthru
          _
      $region48: #{_forward.1} parent=5 // pred_fallthru
        _
    $region6: #{_forward.1} parent=1 // loop_footer
      %s20 = sadd.s32 1, %s16
    $region7: #{_forward.1} parent=1 // loop_footer_branch
      %15 = sbr.rel target = $region3
    $region8: #{_forward.1} parent=1 // loop_exit
      _
    %516 = vsyncpa [#allocation3], 1
    %s517 = scalar_lea.sflag [#allocation3], 1
    %518 = vsyncpa %s517, 1
    %519 = vsyncpa [#allocation6], 1
    %520 = vsyncpa [#allocation4], 1
    %s521 = scalar_lea.sflag [#allocation4], 1
    %522 = vsyncpa %s521, 1

</llo_original>
